<compile_context>
chip_gen: v7x
topology: tpu7x:2x2x1
jax: 0.10.0
libtpu: 0.0.40
codegen_flags: <defaults>
</compile_context>

<pallas_src>
import functools
import math

import jax
import jax.numpy as jnp
from jax.experimental import pallas as pl
from jax.experimental.pallas import tpu as pltpu

_NEG_BIG = -1e30   # finite "-inf": avoids inf - inf = NaN after max-subtraction


def _attention_qv_kernel(tok_ref, emb_ref, pmean_ref, mask_ref,
                         wq_ref, bq_ref, wv_ref, bv_ref, wfc_ref, bfc_ref,
                         out_ref, alpha_ref, *, vocab):
    """One batch tile: b_tile examples x T tokens, flattened to bt_pad slab rows."""
    tok = tok_ref[...]                                   # (bt_pad, 1) int32, pre-clamped
    bt_pad = tok.shape[0]

    # ---- embedding lookup as a one-hot MXU matmul ---------------------------
    vocab_ids = jax.lax.broadcasted_iota(jnp.int32, (bt_pad, vocab), 1)
    onehot = (tok == vocab_ids).astype(jnp.float32)                       # (bt_pad, V)
    x = jnp.dot(onehot, emb_ref[...], preferred_element_type=jnp.float32)  # (bt_pad, E)

    # ---- t_hat = mean over T via the host-built block-diagonal matrix (MXU) -
    t_hat = jnp.dot(pmean_ref[...], x, preferred_element_type=jnp.float32)  # (b_tile, E)

    # ---- q = t_hat @ Wq^T + bq ----------------------------------------------
    q = jnp.dot(t_hat, wq_ref[...], preferred_element_type=jnp.float32) + bq_ref[...]

    # ---- attention scores: contract E on the MXU, masked softmax over tokens
    scores = jax.lax.dot_general(q, x, (((1,), (1,)), ((), ())),
                                 preferred_element_type=jnp.float32)  # (b_tile, bt_pad)
    scores = scores + mask_ref[...]              # 0 on own block, -1e30 elsewhere
    scores = scores - jnp.max(scores, axis=-1, keepdims=True)
    e = jnp.exp(scores)                          # off-block entries underflow to 0
    # Exact reciprocal keeps alpha within 1e-5 of the f32 reference.
    alpha = e * pl.reciprocal(jnp.sum(e, axis=-1, keepdims=True))

    # ---- value projection + attention-weighted pooling (2-D matmuls) --------
    vx = jnp.dot(x, wv_ref[...], preferred_element_type=jnp.float32) + bv_ref[...]
    pooled = jnp.dot(alpha, vx, preferred_element_type=jnp.float32)        # (b_tile, E)

    # ---- classifier: output columns pre-padded to 128 -> unmasked stores ----
    out_ref[...] = (jnp.dot(pooled, wfc_ref[...], preferred_element_type=jnp.float32)
                    + bfc_ref[...])

    # ---- alpha is block-diagonal: compact to one lane-dense row per tile ----
    alpha_ref[...] = jnp.sum(alpha, axis=0, keepdims=True).reshape(alpha_ref.shape)


def _pick_b_tile(seq_len):
    """Smallest sublane-aligned batch tile such that b_tile * T is a lane multiple."""
    return max(128 // math.gcd(seq_len, 128), 8)


def attention_qv_forward(tokens, emb_table, wq, bq, wv, bv, wfc, bfc, *, b_tile=None):
    """tokens: (B, T) int32. Returns (logits (B, 2), alpha (B, T)), float32."""
    B, T = tokens.shape
    V, E = emb_table.shape
    n_out = wfc.shape[0]

    if b_tile is None:
        b_tile = _pick_b_tile(T)
    n_tiles = pl.cdiv(B, b_tile)
    b_pad = n_tiles * b_tile
    bt = b_tile * T
    bt_pad = pl.cdiv(bt, 128) * 128          # == bt when b_tile was auto-picked
    nout_pad = pl.cdiv(n_out, 128) * 128     # lane-dense logits slab

    # Token ids: clamp once host-side (jnp.take semantics; PyTorch nn.Embedding
    # would raise on OOB ids), pad the batch, lay out one (bt_pad, 1) column/tile.
    tok = jnp.clip(tokens.astype(jnp.int32), 0, V - 1)
    tok = jnp.pad(tok, ((0, b_pad - B), (0, 0))).reshape(n_tiles, bt)
    tok = jnp.pad(tok, ((0, 0), (0, bt_pad - bt)))          # padded slots -> id 0
    tok_col = tok.reshape(n_tiles * bt_pad, 1)

    # Host-built constants: block-diagonal averaging matrix + additive softmax mask.
    row = jnp.arange(b_tile)[:, None]
    col = jnp.arange(bt_pad)[None, :]
    same = (col // T == row) & (col < bt)
    p_mean = jnp.where(same, 1.0 / T, 0.0).astype(jnp.float32)      # (b_tile, bt_pad)
    mask_add = jnp.where(same, 0.0, _NEG_BIG).astype(jnp.float32)   # (b_tile, bt_pad)

    # Pre-transpose Linear weights (PyTorch stores (out, in)); zero-pad the
    # classifier to 128 output columns; biases as (1, lanes) tiles.
    wq_t = wq.T.astype(jnp.float32)
    wv_t = wv.T.astype(jnp.float32)
    wfc_pad = jnp.zeros((E, nout_pad), jnp.float32).at[:, :n_out].set(wfc.T)
    bq2 = bq.reshape(1, E).astype(jnp.float32)
    bv2 = bv.reshape(1, E).astype(jnp.float32)
    bfc_pad = jnp.zeros((1, nout_pad), jnp.float32).at[:, :n_out].set(bfc)

    kernel = functools.partial(_attention_qv_kernel, vocab=V)

    const = lambda i: (0, 0)
    grid_spec = pltpu.PrefetchScalarGridSpec(
        num_scalar_prefetch=0,
        grid=(n_tiles,),
        in_specs=[
            pl.BlockSpec((bt_pad, 1), lambda i: (i, 0)),        # token ids (per tile)
            pl.BlockSpec((V, E), const),                        # embedding (resident)
            pl.BlockSpec((b_tile, bt_pad), const),              # mean matrix
            pl.BlockSpec((b_tile, bt_pad), const),              # additive mask
            pl.BlockSpec((E, E), const),                        # Wq^T
            pl.BlockSpec((1, E), const),                        # bq
            pl.BlockSpec((E, E), const),                        # Wv^T
            pl.BlockSpec((1, E), const),                        # bv
            pl.BlockSpec((E, nout_pad), const),                 # Wfc^T (padded)
            pl.BlockSpec((1, nout_pad), const),                 # bfc (padded)
        ],
        out_specs=(
            pl.BlockSpec((b_tile, nout_pad), lambda i: (i, 0)),   # logits slab
            pl.BlockSpec((1, 1, bt_pad), lambda i: (i, 0, 0)),    # compact alpha row
        ),
    )

    out_pad, alpha_pad = pl.pallas_call(
        kernel,
        out_shape=(
            jax.ShapeDtypeStruct((b_pad, nout_pad), jnp.float32),
            jax.ShapeDtypeStruct((n_tiles, 1, bt_pad), jnp.float32),
        ),
        grid_spec=grid_spec,
        compiler_params=pltpu.CompilerParams(
            dimension_semantics=("parallel",),
            vmem_limit_bytes=32 * 1024 * 1024,
        ),
    )(tok_col, emb_table.astype(jnp.float32), p_mean, mask_add,
      wq_t, bq2, wv_t, bv2, wfc_pad, bfc_pad)

    logits = out_pad[:B, :n_out]
    alpha = alpha_pad.reshape(n_tiles, bt_pad)[:, :bt].reshape(b_pad, T)[:B]
    return logits, alpha


def _reference(tokens, emb_table, wq, bq, wv, bv, wfc, bfc):
    """Plain-JAX re-implementation of the PyTorch forward, for checking."""
    x = jnp.take(emb_table, tokens, axis=0)                    # (B, T, E)
    t_hat = jnp.mean(x, axis=1)                                # (B, E)
    q = t_hat @ wq.T + bq                                      # (B, E)
    alpha = jnp.sum(q[:, None, :] * x, axis=-1)                # (B, T)
    alpha = jax.nn.softmax(alpha, axis=-1)
    vx = x @ wv.T + bv                                         # (B, T, E)
    pooled = jnp.sum(vx * alpha[:, :, None], axis=1)           # (B, E)
    out = pooled @ wfc.T + bfc                                 # (B, 2)
    return out, alpha


if __name__ == "__main__":
    B, T, E, V = 2, 8, 32, 16   # batch, seq len, taille_embedding, vocab size

    key = jax.random.PRNGKey(0)
    k_emb, k_wq, k_bq, k_wv, k_bv, k_wfc, k_bfc, k_tok = jax.random.split(key, 8)

    emb_table = jax.random.normal(k_emb, (V, E), dtype=jnp.float32)
    wq = jax.random.normal(k_wq, (E, E), dtype=jnp.float32) * 0.1
    bq = jax.random.normal(k_bq, (E,), dtype=jnp.float32) * 0.1
    wv = jax.random.normal(k_wv, (E, E), dtype=jnp.float32) * 0.1
    bv = jax.random.normal(k_bv, (E,), dtype=jnp.float32) * 0.1
    wfc = jax.random.normal(k_wfc, (2, E), dtype=jnp.float32) * 0.1
    bfc = jax.random.normal(k_bfc, (2,), dtype=jnp.float32) * 0.1
    tokens = jax.random.randint(k_tok, (B, T), 0, V, dtype=jnp.int32)

    out, alpha = attention_qv_forward(tokens, emb_table, wq, bq, wv, bv, wfc, bfc)
    jax.block_until_ready((out, alpha))

    ref_out, ref_alpha = _reference(tokens, emb_table, wq, bq, wv, bv, wfc, bfc)
    assert out.shape == (B, 2) and alpha.shape == (B, T)
    assert jnp.allclose(out, ref_out, atol=1e-4, rtol=1e-4)
    assert jnp.allclose(alpha, ref_alpha, atol=1e-5, rtol=1e-5)

    print("KERNEL_OK")
</pallas_src>

<mosaic_0001>
module attributes {stable_mosaic.version = 11 : i64} {
  func.func @_attention_qv_kernel(%arg0: i32, %arg1: memref<128x1xi32, #tpu.memory_space<vmem>>, %arg2: memref<16x32xf32, #tpu.memory_space<vmem>>, %arg3: memref<16x128xf32, #tpu.memory_space<vmem>>, %arg4: memref<16x128xf32, #tpu.memory_space<vmem>>, %arg5: memref<32x32xf32, #tpu.memory_space<vmem>>, %arg6: memref<1x32xf32, #tpu.memory_space<vmem>>, %arg7: memref<32x32xf32, #tpu.memory_space<vmem>>, %arg8: memref<1x32xf32, #tpu.memory_space<vmem>>, %arg9: memref<32x128xf32, #tpu.memory_space<vmem>>, %arg10: memref<1x128xf32, #tpu.memory_space<vmem>>, %arg11: memref<16x128xf32, #tpu.memory_space<vmem>>, %arg12: memref<1x1x128xf32, #tpu.memory_space<vmem>>) attributes {dimension_semantics = [#tpu.dimension_semantics<parallel>], iteration_bounds = array<i64: 1>, scalar_prefetch = 0 : i64, scratch_operands = 0 : i64, tpu.core_type = #tpu.core_type<tc>, window_params = [{transform_indices = @transform_0, window_bounds = array<i64: 128, 1>}, {pipeline_mode = #tpu.pipeline_mode<synchronous>, transform_indices = @transform_1, window_bounds = array<i64: 16, 32>}, {pipeline_mode = #tpu.pipeline_mode<synchronous>, transform_indices = @transform_2, window_bounds = array<i64: 16, 128>}, {pipeline_mode = #tpu.pipeline_mode<synchronous>, transform_indices = @transform_3, window_bounds = array<i64: 16, 128>}, {pipeline_mode = #tpu.pipeline_mode<synchronous>, transform_indices = @transform_4, window_bounds = array<i64: 32, 32>}, {pipeline_mode = #tpu.pipeline_mode<synchronous>, transform_indices = @transform_5, window_bounds = array<i64: 1, 32>}, {pipeline_mode = #tpu.pipeline_mode<synchronous>, transform_indices = @transform_6, window_bounds = array<i64: 32, 32>}, {pipeline_mode = #tpu.pipeline_mode<synchronous>, transform_indices = @transform_7, window_bounds = array<i64: 1, 32>}, {pipeline_mode = #tpu.pipeline_mode<synchronous>, transform_indices = @transform_8, window_bounds = array<i64: 32, 128>}, {pipeline_mode = #tpu.pipeline_mode<synchronous>, transform_indices = @transform_9, window_bounds = array<i64: 1, 128>}, {transform_indices = @transform_10, window_bounds = array<i64: 16, 128>}, {transform_indices = @transform_11, window_bounds = array<i64: 1, 1, 128>}]} {
    %c0 = arith.constant 0 : index
    %c0_0 = arith.constant 0 : index
    %0 = vector.load %arg1[%c0, %c0_0] : memref<128x1xi32, #tpu.memory_space<vmem>>, vector<128x1xi32>
    %1 = tpu.iota {dimensions = array<i32: 1>} : vector<128x16xi32>
    %2 = vector.broadcast %0 : vector<128x1xi32> to vector<128x16xi32>
    %3 = arith.cmpi eq, %2, %1 : vector<128x16xi32>
    %4 = arith.extui %3 : vector<128x16xi1> to vector<128x16xi32>
    %5 = arith.sitofp %4 : vector<128x16xi32> to vector<128x16xf32>
    %c0_1 = arith.constant 0 : index
    %c0_2 = arith.constant 0 : index
    %6 = vector.load %arg2[%c0_1, %c0_2] : memref<16x32xf32, #tpu.memory_space<vmem>>, vector<16x32xf32>
    %cst = arith.constant dense<0.000000e+00> : vector<128x32xf32>
    %7 = tpu.matmul %5, %6, %cst {dimension_numbers = #tpu.dot_dimension_numbers<[1], [0], [0], [1], [0, 0, 1, 1], [], []>} : vector<128x16xf32>, vector<16x32xf32>, vector<128x32xf32> -> vector<128x32xf32>
    %c0_3 = arith.constant 0 : index
    %c0_4 = arith.constant 0 : index
    %8 = vector.load %arg3[%c0_3, %c0_4] : memref<16x128xf32, #tpu.memory_space<vmem>>, vector<16x128xf32>
    %cst_5 = arith.constant dense<0.000000e+00> : vector<16x32xf32>
    %9 = tpu.matmul %8, %7, %cst_5 {dimension_numbers = #tpu.dot_dimension_numbers<[1], [0], [0], [1], [0, 0, 1, 1], [], []>} : vector<16x128xf32>, vector<128x32xf32>, vector<16x32xf32> -> vector<16x32xf32>
    %c0_6 = arith.constant 0 : index
    %c0_7 = arith.constant 0 : index
    %10 = vector.load %arg5[%c0_6, %c0_7] : memref<32x32xf32, #tpu.memory_space<vmem>>, vector<32x32xf32>
    %cst_8 = arith.constant dense<0.000000e+00> : vector<16x32xf32>
    %11 = tpu.matmul %9, %10, %cst_8 {dimension_numbers = #tpu.dot_dimension_numbers<[1], [0], [0], [1], [0, 0, 1, 1], [], []>} : vector<16x32xf32>, vector<32x32xf32>, vector<16x32xf32> -> vector<16x32xf32>
    %c0_9 = arith.constant 0 : index
    %c0_10 = arith.constant 0 : index
    %12 = vector.load %arg6[%c0_9, %c0_10] : memref<1x32xf32, #tpu.memory_space<vmem>>, vector<1x32xf32>
    %13 = vector.broadcast %12 : vector<1x32xf32> to vector<16x32xf32>
    %14 = arith.addf %11, %13 : vector<16x32xf32>
    %cst_11 = arith.constant dense<0.000000e+00> : vector<16x128xf32>
    %15 = tpu.matmul %14, %7, %cst_11 {dimension_numbers = #tpu.dot_dimension_numbers<[1], [1], [0], [0], [0, 0, 1, 0], [], []>} : vector<16x32xf32>, vector<128x32xf32>, vector<16x128xf32> -> vector<16x128xf32>
    %c0_12 = arith.constant 0 : index
    %c0_13 = arith.constant 0 : index
    %16 = vector.load %arg4[%c0_12, %c0_13] : memref<16x128xf32, #tpu.memory_space<vmem>>, vector<16x128xf32>
    %17 = arith.addf %15, %16 : vector<16x128xf32>
    %cst_14 = arith.constant dense<0xFF800000> : vector<16xf32>
    %18 = vector.multi_reduction <maximumf>, %17, %cst_14 [1] : vector<16x128xf32> to vector<16xf32>
    %19 = vector.shape_cast %18 : vector<16xf32> to vector<16x1xf32>
    %20 = vector.broadcast %19 : vector<16x1xf32> to vector<16x128xf32>
    %21 = arith.subf %17, %20 : vector<16x128xf32>
    %22 = math.exp %21 : vector<16x128xf32>
    %cst_15 = arith.constant dense<0.000000e+00> : vector<16xf32>
    %23 = vector.multi_reduction <add>, %22, %cst_15 [1] : vector<16x128xf32> to vector<16xf32>
    %24 = vector.shape_cast %23 : vector<16xf32> to vector<16x1xf32>
    %25 = tpu.reciprocal %24 : vector<16x1xf32> -> vector<16x1xf32>
    %26 = vector.broadcast %25 : vector<16x1xf32> to vector<16x128xf32>
    %27 = arith.mulf %22, %26 : vector<16x128xf32>
    %c0_16 = arith.constant 0 : index
    %c0_17 = arith.constant 0 : index
    %28 = vector.load %arg7[%c0_16, %c0_17] : memref<32x32xf32, #tpu.memory_space<vmem>>, vector<32x32xf32>
    %cst_18 = arith.constant dense<0.000000e+00> : vector<128x32xf32>
    %29 = tpu.matmul %7, %28, %cst_18 {dimension_numbers = #tpu.dot_dimension_numbers<[1], [0], [0], [1], [0, 0, 1, 1], [], []>} : vector<128x32xf32>, vector<32x32xf32>, vector<128x32xf32> -> vector<128x32xf32>
    %c0_19 = arith.constant 0 : index
    %c0_20 = arith.constant 0 : index
    %30 = vector.load %arg8[%c0_19, %c0_20] : memref<1x32xf32, #tpu.memory_space<vmem>>, vector<1x32xf32>
    %31 = vector.broadcast %30 : vector<1x32xf32> to vector<128x32xf32>
    %32 = arith.addf %29, %31 : vector<128x32xf32>
    %cst_21 = arith.constant dense<0.000000e+00> : vector<16x32xf32>
    %33 = tpu.matmul %27, %32, %cst_21 {dimension_numbers = #tpu.dot_dimension_numbers<[1], [0], [0], [1], [0, 0, 1, 1], [], []>} : vector<16x128xf32>, vector<128x32xf32>, vector<16x32xf32> -> vector<16x32xf32>
    %c0_22 = arith.constant 0 : index
    %c0_23 = arith.constant 0 : index
    %34 = vector.load %arg9[%c0_22, %c0_23] : memref<32x128xf32, #tpu.memory_space<vmem>>, vector<32x128xf32>
    %cst_24 = arith.constant dense<0.000000e+00> : vector<16x128xf32>
    %35 = tpu.matmul %33, %34, %cst_24 {dimension_numbers = #tpu.dot_dimension_numbers<[1], [0], [0], [1], [0, 0, 1, 1], [], []>} : vector<16x32xf32>, vector<32x128xf32>, vector<16x128xf32> -> vector<16x128xf32>
    %c0_25 = arith.constant 0 : index
    %c0_26 = arith.constant 0 : index
    %36 = vector.load %arg10[%c0_25, %c0_26] : memref<1x128xf32, #tpu.memory_space<vmem>>, vector<1x128xf32>
    %37 = vector.broadcast %36 : vector<1x128xf32> to vector<16x128xf32>
    %38 = arith.addf %35, %37 : vector<16x128xf32>
    %c0_27 = arith.constant 0 : index
    %c0_28 = arith.constant 0 : index
    %39 = vector.load %arg11[%c0_27, %c0_28] : memref<16x128xf32, #tpu.memory_space<vmem>>, vector<16x128xf32>
    tpu.vector_store %arg11[%c0_27, %c0_28], %38 {strides = array<i32>} : memref<16x128xf32, #tpu.memory_space<vmem>>, vector<16x128xf32>,
    %cst_29 = arith.constant dense<0.000000e+00> : vector<128xf32>
    %40 = vector.multi_reduction <add>, %27, %cst_29 [0] : vector<16x128xf32> to vector<128xf32>
    %41 = vector.shape_cast %40 : vector<128xf32> to vector<1x128xf32>
    %42 = vector.shape_cast %41 : vector<1x128xf32> to vector<1x1x128xf32>
    %c0_30 = arith.constant 0 : index
    %c0_31 = arith.constant 0 : index
    %c0_32 = arith.constant 0 : index
    %43 = vector.load %arg12[%c0_30, %c0_31, %c0_32] : memref<1x1x128xf32, #tpu.memory_space<vmem>>, vector<1x1x128xf32>
    tpu.vector_store %arg12[%c0_30, %c0_31, %c0_32], %42 {strides = array<i32>} : memref<1x1x128xf32, #tpu.memory_space<vmem>>, vector<1x1x128xf32>,
    return
  }
  func.func @transform_0(%arg0: i32) -> (i32, i32) {
    %c0_i32 = arith.constant 0 : i32
    %c0_i32_0 = arith.constant 0 : i32
    return %arg0, %c0_i32 : i32, i32
  }
  func.func @transform_1(%arg0: i32) -> (i32, i32) {
    %c0_i32 = arith.constant 0 : i32
    %c0_i32_0 = arith.constant 0 : i32
    %c0_i32_1 = arith.constant 0 : i32
    return %c0_i32, %c0_i32_0 : i32, i32
  }
  func.func @transform_2(%arg0: i32) -> (i32, i32) {
    %c0_i32 = arith.constant 0 : i32
    %c0_i32_0 = arith.constant 0 : i32
    %c0_i32_1 = arith.constant 0 : i32
    return %c0_i32, %c0_i32_0 : i32, i32
  }
  func.func @transform_3(%arg0: i32) -> (i32, i32) {
    %c0_i32 = arith.constant 0 : i32
    %c0_i32_0 = arith.constant 0 : i32
    %c0_i32_1 = arith.constant 0 : i32
    return %c0_i32, %c0_i32_0 : i32, i32
  }
  func.func @transform_4(%arg0: i32) -> (i32, i32) {
    %c0_i32 = arith.constant 0 : i32
    %c0_i32_0 = arith.constant 0 : i32
    %c0_i32_1 = arith.constant 0 : i32
    return %c0_i32, %c0_i32_0 : i32, i32
  }
  func.func @transform_5(%arg0: i32) -> (i32, i32) {
    %c0_i32 = arith.constant 0 : i32
    %c0_i32_0 = arith.constant 0 : i32
    %c0_i32_1 = arith.constant 0 : i32
    return %c0_i32, %c0_i32_0 : i32, i32
  }
  func.func @transform_6(%arg0: i32) -> (i32, i32) {
    %c0_i32 = arith.constant 0 : i32
    %c0_i32_0 = arith.constant 0 : i32
    %c0_i32_1 = arith.constant 0 : i32
    return %c0_i32, %c0_i32_0 : i32, i32
  }
  func.func @transform_7(%arg0: i32) -> (i32, i32) {
    %c0_i32 = arith.constant 0 : i32
    %c0_i32_0 = arith.constant 0 : i32
    %c0_i32_1 = arith.constant 0 : i32
    return %c0_i32, %c0_i32_0 : i32, i32
  }
  func.func @transform_8(%arg0: i32) -> (i32, i32) {
    %c0_i32 = arith.constant 0 : i32
    %c0_i32_0 = arith.constant 0 : i32
    %c0_i32_1 = arith.constant 0 : i32
    return %c0_i32, %c0_i32_0 : i32, i32
  }
  func.func @transform_9(%arg0: i32) -> (i32, i32) {
    %c0_i32 = arith.constant 0 : i32
    %c0_i32_0 = arith.constant 0 : i32
    %c0_i32_1 = arith.constant 0 : i32
    return %c0_i32, %c0_i32_0 : i32, i32
  }
  func.func @transform_10(%arg0: i32) -> (i32, i32) {
    %c0_i32 = arith.constant 0 : i32
    %c0_i32_0 = arith.constant 0 : i32
    return %arg0, %c0_i32 : i32, i32
  }
  func.func @transform_11(%arg0: i32) -> (i32, i32, i32) {
    %c0_i32 = arith.constant 0 : i32
    %c0_i32_0 = arith.constant 0 : i32
    %c0_i32_1 = arith.constant 0 : i32
    return %arg0, %c0_i32, %c0_i32_0 : i32, i32, i32
  }
}

</mosaic_0001>

<llo_original>
// kernel: tpu_custom_call.1
$region0: #{tpu_custom_call.1}
  #allocation0 [shape = 'u32[]', space=smem, size = 0x4, offset = 0x4, fixed_abs, tag = 'smem constant byte address 0x4 - core index']
  #allocation1 [shape = 'u32[144,128]{1,0:T(1,128)}', space=vmem, size = 0x12000, scoped, tag = 'internal scratch']
  %s0 = inlined_call_operand.vmem [shape: s32[128,1], index: 0, kind: input, shape index: {}]
  %s1 = inlined_call_operand.vmem [shape: f32[16,32], index: 1, kind: input, shape index: {}]
  %s2 = inlined_call_operand.vmem [shape: f32[16,128], index: 2, kind: input, shape index: {}]
  %s3 = inlined_call_operand.hbm [shape: f32[16,128], index: 3, kind: input, shape index: {}]
  %s4 = inlined_call_operand.vmem [shape: f32[32,32], index: 4, kind: input, shape index: {}]
  %s5 = inlined_call_operand.vmem [shape: f32[1,32], index: 5, kind: input, shape index: {}]
  %s6 = inlined_call_operand.vmem [shape: f32[32,32], index: 6, kind: input, shape index: {}]
  %s7 = inlined_call_operand.vmem [shape: f32[1,32], index: 7, kind: input, shape index: {}]
  %s8 = inlined_call_operand.vmem [shape: f32[32,128], index: 8, kind: input, shape index: {}]
  %s9 = inlined_call_operand.vmem [shape: f32[1,128], index: 9, kind: input, shape index: {}]
  %s10 = inlined_call_operand.hbm [shape: f32[16,128], index: 10, kind: output, shape index: {0}]
  %s11 = inlined_call_operand.hbm [shape: f32[1,1,128], index: 11, kind: output, shape index: {1}]
  %12 = xla_tuple %s10, %s11
  %s13 = sld [smem:[#allocation0]]
  $region62: #{tpu_custom_call.1} parent=0
    _
  %s15 = ssub.s32 1, %s13
  %s16 = scalar_select 0, %s15, %s13
  $region1: #{tpu_custom_call.1} parent=0
    #allocation2 [shape = 'u8[8192]{0}', space=vmem, size = 0x2000, scoped, tag = 'input window, operand 3, single buffered']
    #allocation3 [shape = 's32[1]{0}', space=sflag, size = 0x4, scoped, tag = 'scoped memory for tpu_custom_call.1']
    #allocation4 [shape = 's32[1]{0}', space=sflag, size = 0x4, scoped, tag = 'scoped memory for tpu_custom_call.1']
    #allocation5 [shape = 'u8[8192]{0}', space=vmem, size = 0x2000, scoped, tag = 'output window, operand 0, single buffered']
    #allocation6 [shape = 'u8[512]{0}', space=vmem, size = 0x400, scoped, tag = 'output window, operand 1, single buffered']
    #allocation7 [shape = 's32[1]{0}', space=sflag, size = 0x4, scoped, tag = 'scoped memory for tpu_custom_call.1']
    %17 = vsyncpa [#allocation3], 0
    %18 = vsyncpa [#allocation4], 0
    %19 = vsyncpa [#allocation7], 0
    // Predicated region
    $region2: #{tpu_custom_call.1} parent=1 // pred_check
      _
    $region3: #{tpu_custom_call.1} parent=1 // pred_check_branch
      %21 = sbr.rel (0) target = $region5
    $region4: #{tpu_custom_call.1} parent=1 // pred_region
      _
    $region5: #{tpu_custom_call.1} parent=1 // pred_fallthru
      _
    // Predicated region
    $region6: #{tpu_custom_call.1} parent=1 // pred_check
      _
    $region7: #{tpu_custom_call.1} parent=1 // pred_check_branch
      %23 = sbr.rel (0) target = $region9
    $region8: #{tpu_custom_call.1} parent=1 // pred_region
      _
    $region9: #{tpu_custom_call.1} parent=1 // pred_fallthru
      _
    // Predicated region
    $region10: #{tpu_custom_call.1} parent=1 // pred_check
      _
    $region11: #{tpu_custom_call.1} parent=1 // pred_check_branch
      %25 = sbr.rel (0) target = $region13
    $region12: #{tpu_custom_call.1} parent=1 // pred_region
      _
    $region13: #{tpu_custom_call.1} parent=1 // pred_fallthru
      _
    // Predicated region
    $region14: #{tpu_custom_call.1} parent=1 // pred_check
      _
    $region15: #{tpu_custom_call.1} parent=1 // pred_check_branch
      %27 = sbr.rel (0) target = $region17
    $region16: #{tpu_custom_call.1} parent=1 // pred_region
      %s29 = ssub.s32 256, 256
      %30 = vsyncadd [#allocation3], %s29
      %s31 = sshll.u32 [#allocation2], 4
      %s32 = int_to_ptr.vmem [resolvable:$true] %s31
      %37 = dma.hbm_to_vmem [thread:$0]  %s3, 256, %s32, [#allocation3], 128, 128, 8
    $region17: #{tpu_custom_call.1} parent=1 // pred_fallthru
      _
    // Predicated region
    $region18: #{tpu_custom_call.1} parent=1 // pred_check
      _
    $region19: #{tpu_custom_call.1} parent=1 // pred_check_branch
      %39 = sbr.rel (0) target = $region21
    $region20: #{tpu_custom_call.1} parent=1 // pred_region
      _
    $region21: #{tpu_custom_call.1} parent=1 // pred_fallthru
      _
    // Predicated region
    $region22: #{tpu_custom_call.1} parent=1 // pred_check
      _
    $region23: #{tpu_custom_call.1} parent=1 // pred_check_branch
      %41 = sbr.rel (0) target = $region25
    $region24: #{tpu_custom_call.1} parent=1 // pred_region
      _
    $region25: #{tpu_custom_call.1} parent=1 // pred_fallthru
      _
    // Predicated region
    $region26: #{tpu_custom_call.1} parent=1 // pred_check
      _
    $region27: #{tpu_custom_call.1} parent=1 // pred_check_branch
      %43 = sbr.rel (0) target = $region29
    $region28: #{tpu_custom_call.1} parent=1 // pred_region
      _
    $region29: #{tpu_custom_call.1} parent=1 // pred_fallthru
      _
    // Predicated region
    $region30: #{tpu_custom_call.1} parent=1 // pred_check
      _
    $region31: #{tpu_custom_call.1} parent=1 // pred_check_branch
      %45 = sbr.rel (0) target = $region33
    $region32: #{tpu_custom_call.1} parent=1 // pred_region
      _
    $region33: #{tpu_custom_call.1} parent=1 // pred_fallthru
      _
    // Predicated region
    $region34: #{tpu_custom_call.1} parent=1 // pred_check
      _
    $region35: #{tpu_custom_call.1} parent=1 // pred_check_branch
      %47 = sbr.rel (0) target = $region37
    $region36: #{tpu_custom_call.1} parent=1 // pred_region
      _
    $region37: #{tpu_custom_call.1} parent=1 // pred_fallthru
      _
    // Predicated region
    $region38: #{tpu_custom_call.1} parent=1 // pred_check
      _
    $region39: #{tpu_custom_call.1} parent=1 // pred_check_branch
      %49 = sbr.rel (0) target = $region41
    $region40: #{tpu_custom_call.1} parent=1 // pred_region
      _
    $region41: #{tpu_custom_call.1} parent=1 // pred_fallthru
      _
    // Predicated region
    $region42: #{tpu_custom_call.1} parent=1 // pred_check
      _
    $region43: #{tpu_custom_call.1} parent=1 // pred_check_branch
      %51 = sbr.rel (0) target = $region45
    $region44: #{tpu_custom_call.1} parent=1 // pred_region
      %52 = dma.done [#allocation3], 256
    $region45: #{tpu_custom_call.1} parent=1 // pred_fallthru
      _
    %v53 = vld [vmem:[%s0] sm:$0xff]
    %v54 = vld [vmem:[%s0 + $0x8] sm:$0xff]
    %v55 = vld [vmem:[%s0 + $0x10] sm:$0xff]
    %v56 = vld [vmem:[%s0 + $0x18] sm:$0xff]
    %v57 = vld [vmem:[%s0 + $0x20] sm:$0xff]
    %v58 = vld [vmem:[%s0 + $0x28] sm:$0xff]
    %v59 = vld [vmem:[%s0 + $0x30] sm:$0xff]
    %v60 = vld [vmem:[%s0 + $0x38] sm:$0xff]
    %v61 = vld [vmem:[%s0 + $0x40] sm:$0xff]
    %v62 = vld [vmem:[%s0 + $0x48] sm:$0xff]
    %v63 = vld [vmem:[%s0 + $0x50] sm:$0xff]
    %v64 = vld [vmem:[%s0 + $0x58] sm:$0xff]
    %v65 = vld [vmem:[%s0 + $0x60] sm:$0xff]
    %v66 = vld [vmem:[%s0 + $0x68] sm:$0xff]
    %v67 = vld [vmem:[%s0 + $0x70] sm:$0xff]
    %v68 = vld [vmem:[%s0 + $0x78] sm:$0xff]
    %v69 = vlaneseq
    %v70 = vand.u32 %v69, 127
    %71 = vset.pattern.permute.xlu0 0
    %72 = vperm.xlu0 %71, %v53
    %v73 = vpop.permute.xlu0 %72
    %74 = vset.pattern.permute.xlu0 0
    %75 = vperm.xlu0 %74, %v54
    %v76 = vpop.permute.xlu0 %75
    %77 = vset.pattern.permute.xlu0 0
    %78 = vperm.xlu0 %77, %v55
    %v79 = vpop.permute.xlu0 %78
    %80 = vset.pattern.permute.xlu0 0
    %81 = vperm.xlu0 %80, %v56
    %v82 = vpop.permute.xlu0 %81
    %83 = vset.pattern.permute.xlu0 0
    %84 = vperm.xlu0 %83, %v57
    %v85 = vpop.permute.xlu0 %84
    %86 = vset.pattern.permute.xlu0 0
    %87 = vperm.xlu0 %86, %v58
    %v88 = vpop.permute.xlu0 %87
    %89 = vset.pattern.permute.xlu0 0
    %90 = vperm.xlu0 %89, %v59
    %v91 = vpop.permute.xlu0 %90
    %92 = vset.pattern.permute.xlu0 0
    %93 = vperm.xlu0 %92, %v60
    %v94 = vpop.permute.xlu0 %93
    %95 = vset.pattern.permute.xlu0 0
    %96 = vperm.xlu0 %95, %v61
    %v97 = vpop.permute.xlu0 %96
    %98 = vset.pattern.permute.xlu0 0
    %99 = vperm.xlu0 %98, %v62
    %v100 = vpop.permute.xlu0 %99
    %101 = vset.pattern.permute.xlu0 0
    %102 = vperm.xlu0 %101, %v63
    %v103 = vpop.permute.xlu0 %102
    %104 = vset.pattern.permute.xlu0 0
    %105 = vperm.xlu0 %104, %v64
    %v106 = vpop.permute.xlu0 %105
    %107 = vset.pattern.permute.xlu0 0
    %108 = vperm.xlu0 %107, %v65
    %v109 = vpop.permute.xlu0 %108
    %110 = vset.pattern.permute.xlu0 0
    %111 = vperm.xlu0 %110, %v66
    %v112 = vpop.permute.xlu0 %111
    %113 = vset.pattern.permute.xlu0 0
    %114 = vperm.xlu0 %113, %v67
    %v115 = vpop.permute.xlu0 %114
    %116 = vset.pattern.permute.xlu0 0
    %117 = vperm.xlu0 %116, %v68
    %v118 = vpop.permute.xlu0 %117
    %vm119 = vcmp.eq.s32.totalorder %v73, %v70
    %vm120 = vcmp.eq.s32.totalorder %v76, %v70
    %vm121 = vcmp.eq.s32.totalorder %v79, %v70
    %vm122 = vcmp.eq.s32.totalorder %v82, %v70
    %vm123 = vcmp.eq.s32.totalorder %v85, %v70
    %vm124 = vcmp.eq.s32.totalorder %v88, %v70
    %vm125 = vcmp.eq.s32.totalorder %v91, %v70
    %vm126 = vcmp.eq.s32.totalorder %v94, %v70
    %vm127 = vcmp.eq.s32.totalorder %v97, %v70
    %vm128 = vcmp.eq.s32.totalorder %v100, %v70
    %vm129 = vcmp.eq.s32.totalorder %v103, %v70
    %vm130 = vcmp.eq.s32.totalorder %v106, %v70
    %vm131 = vcmp.eq.s32.totalorder %v109, %v70
    %vm132 = vcmp.eq.s32.totalorder %v112, %v70
    %vm133 = vcmp.eq.s32.totalorder %v115, %v70
    %vm134 = vcmp.eq.s32.totalorder %v118, %v70
    %v135 = vsel %vm119, 1, 0
    %v136 = vsel %vm120, 1, 0
    %v137 = vsel %vm121, 1, 0
    %v138 = vsel %vm122, 1, 0
    %v139 = vsel %vm123, 1, 0
    %v140 = vsel %vm124, 1, 0
    %v141 = vsel %vm125, 1, 0
    %v142 = vsel %vm126, 1, 0
    %v143 = vsel %vm127, 1, 0
    %v144 = vsel %vm128, 1, 0
    %v145 = vsel %vm129, 1, 0
    %v146 = vsel %vm130, 1, 0
    %v147 = vsel %vm131, 1, 0
    %v148 = vsel %vm132, 1, 0
    %v149 = vsel %vm133, 1, 0
    %v150 = vsel %vm134, 1, 0
    %v151 = vcvt.s32.f32 %v135
    %v152 = vcvt.s32.f32 %v136
    %v153 = vcvt.s32.f32 %v137
    %v154 = vcvt.s32.f32 %v138
    %v155 = vcvt.s32.f32 %v139
    %v156 = vcvt.s32.f32 %v140
    %v157 = vcvt.s32.f32 %v141
    %v158 = vcvt.s32.f32 %v142
    %v159 = vcvt.s32.f32 %v143
    %v160 = vcvt.s32.f32 %v144
    %v161 = vcvt.s32.f32 %v145
    %v162 = vcvt.s32.f32 %v146
    %v163 = vcvt.s32.f32 %v147
    %v164 = vcvt.s32.f32 %v148
    %v165 = vcvt.s32.f32 %v149
    %v166 = vcvt.s32.f32 %v150
    %v167 = vld [vmem:[%s1] sm:$0xff]
    %v168 = vld [vmem:[%s1 + $0x8] sm:$0xff]
    %vm169 = vcmask 130048
    %v171 = vsel %vm169, %v151, 0
    %v174 = vsel %vm169, %v152, 0
    %v177 = vsel %vm169, %v153, 0
    %v180 = vsel %vm169, %v154, 0
    %v183 = vsel %vm169, %v155, 0
    %v186 = vsel %vm169, %v156, 0
    %v189 = vsel %vm169, %v157, 0
    %v192 = vsel %vm169, %v158, 0
    %v195 = vsel %vm169, %v159, 0
    %v198 = vsel %vm169, %v160, 0
    %v201 = vsel %vm169, %v161, 0
    %v204 = vsel %vm169, %v162, 0
    %v207 = vsel %vm169, %v163, 0
    %v210 = vsel %vm169, %v164, 0
    %v213 = vsel %vm169, %v165, 0
    %v216 = vsel %vm169, %v166, 0
    %218 = vmatprep.subr.mxu0 0.0
    %219 = vmatpush1.msra.mxu0 %v167
    %220 = vmatprep.subr.mxu0 0.0
    %221 = vmatpush1.msra.mxu0 %v168
    %222 = vmatprep.subr.mxu0 0.0
    %223 = vmatpush1.msra.mxu0 0.0
    %224 = vmatprep.subr.mxu0 0.0
    %225 = vmatpush1.msra.mxu0 0.0
    %226 = vmatprep.subr.mxu0 0.0
    %227 = vmatpush1.msra.mxu0 0.0
    %228 = vmatprep.subr.mxu0 0.0
    %229 = vmatpush1.msra.mxu0 0.0
    %230 = vmatprep.subr.mxu0 0.0
    %231 = vmatpush1.msra.mxu0 0.0
    %232 = vmatprep.subr.mxu0 0.0
    %233 = vmatpush1.msra.mxu0 0.0
    %234 = vmatprep.subr.mxu0 0.0
    %235 = vmatpush1.msra.mxu0 0.0
    %236 = vmatprep.subr.mxu0 0.0
    %237 = vmatpush1.msra.mxu0 0.0
    %238 = vmatprep.subr.mxu0 0.0
    %239 = vmatpush1.msra.mxu0 0.0
    %240 = vmatprep.subr.mxu0 0.0
    %241 = vmatpush1.msra.mxu0 0.0
    %242 = vmatprep.subr.mxu0 0.0
    %243 = vmatpush1.msra.mxu0 0.0
    %244 = vmatprep.subr.mxu0 0.0
    %245 = vmatpush1.msra.mxu0 0.0
    %246 = vmatprep.subr.mxu0 0.0
    %247 = vmatpush1.msra.mxu0 0.0
    %248 = vmatprep.subr.mxu0 0.0
    %249 = vmatpush1.msra.mxu0 0.0
    %250 = vmatprep.subr.mxu0 0.0
    %251 = vmatpush1.msra.mxu0 0.0
    %252 = vmatprep.subr.mxu0 0.0
    %253 = vmatpush1.msra.mxu0 0.0
    %254 = vmatprep.subr.mxu0 0.0
    %255 = vmatpush1.msra.mxu0 0.0
    %256 = vmatprep.subr.mxu0 0.0
    %257 = vmatpush1.msra.mxu0 0.0
    %258 = vmatprep.subr.mxu0 0.0
    %259 = vmatpush1.msra.mxu0 0.0
    %260 = vmatprep.subr.mxu0 0.0
    %261 = vmatpush1.msra.mxu0 0.0
    %262 = vmatprep.subr.mxu0 0.0
    %263 = vmatpush1.msra.mxu0 0.0
    %264 = vmatprep.subr.mxu0 0.0
    %265 = vmatpush1.msra.mxu0 0.0
    %266 = vmatprep.subr.mxu0 0.0
    %267 = vmatpush1.msra.mxu0 0.0
    %268 = vmatprep.subr.mxu0 0.0
    %269 = vmatpush1.msra.mxu0 0.0
    %270 = vmatprep.subr.mxu0 0.0
    %271 = vmatpush1.msra.mxu0 0.0
    %272 = vmatprep.subr.mxu0 0.0
    %273 = vmatpush1.msra.mxu0 0.0
    %274 = vmatprep.subr.mxu0 0.0
    %275 = vmatpush1.msra.mxu0 0.0
    %276 = vmatprep.subr.mxu0 0.0
    %277 = vmatpush1.msra.mxu0 0.0
    %278 = vmatprep.subr.mxu0 0.0
    %279 = vmatpush1.msra.mxu0 0.0
    %280 = vmatprep.subr.mxu0 0.0
    %281 = vmatpush1.msra.mxu0 0.0
    %282 = vmatprep.mubr.f32.mxu0 0.0
    %283 = vmatmul.mubr.f32.gmra.mrb[0].mxu0 %v171
    %v284 = vpop.f32.mrb[0].mxu0
    %v285 = vadd.f32 0.0, %v284
    %v286 = vpop.f32.mrb[0].mxu0
    %287 = vmatprep.mubr.f32.mxu0 0.0
    %288 = vmatmul.mubr.f32.gmra.mrb[0].mxu0 %v174
    %v289 = vpop.f32.mrb[0].mxu0
    %v290 = vadd.f32 0.0, %v289
    %v291 = vpop.f32.mrb[0].mxu0
    %292 = vmatprep.mubr.f32.mxu0 0.0
    %293 = vmatmul.mubr.f32.gmra.mrb[0].mxu0 %v177
    %v294 = vpop.f32.mrb[0].mxu0
    %v295 = vadd.f32 0.0, %v294
    %v296 = vpop.f32.mrb[0].mxu0
    %297 = vmatprep.mubr.f32.mxu0 0.0
    %298 = vmatmul.mubr.f32.gmra.mrb[0].mxu0 %v180
    %v299 = vpop.f32.mrb[0].mxu0
    %v300 = vadd.f32 0.0, %v299
    %v301 = vpop.f32.mrb[0].mxu0
    %302 = vmatprep.mubr.f32.mxu0 0.0
    %303 = vmatmul.mubr.f32.gmra.mrb[0].mxu0 %v183
    %v304 = vpop.f32.mrb[0].mxu0
    %v305 = vadd.f32 0.0, %v304
    %v306 = vpop.f32.mrb[0].mxu0
    %307 = vmatprep.mubr.f32.mxu0 0.0
    %308 = vmatmul.mubr.f32.gmra.mrb[0].mxu0 %v186
    %v309 = vpop.f32.mrb[0].mxu0
    %v310 = vadd.f32 0.0, %v309
    %v311 = vpop.f32.mrb[0].mxu0
    %312 = vmatprep.mubr.f32.mxu0 0.0
    %313 = vmatmul.mubr.f32.gmra.mrb[0].mxu0 %v189
    %v314 = vpop.f32.mrb[0].mxu0
    %v315 = vadd.f32 0.0, %v314
    %v316 = vpop.f32.mrb[0].mxu0
    %317 = vmatprep.mubr.f32.mxu0 0.0
    %318 = vmatmul.mubr.f32.gmra.mrb[0].mxu0 %v192
    %v319 = vpop.f32.mrb[0].mxu0
    %v320 = vadd.f32 0.0, %v319
    %v321 = vpop.f32.mrb[0].mxu0
    %322 = vmatprep.mubr.f32.mxu0 0.0
    %323 = vmatmul.mubr.f32.gmra.mrb[0].mxu0 %v195
    %v324 = vpop.f32.mrb[0].mxu0
    %v325 = vadd.f32 0.0, %v324
    %v326 = vpop.f32.mrb[0].mxu0
    %327 = vmatprep.mubr.f32.mxu0 0.0
    %328 = vmatmul.mubr.f32.gmra.mrb[0].mxu0 %v198
    %v329 = vpop.f32.mrb[0].mxu0
    %v330 = vadd.f32 0.0, %v329
    %v331 = vpop.f32.mrb[0].mxu0
    %332 = vmatprep.mubr.f32.mxu0 0.0
    %333 = vmatmul.mubr.f32.gmra.mrb[0].mxu0 %v201
    %v334 = vpop.f32.mrb[0].mxu0
    %v335 = vadd.f32 0.0, %v334
    %v336 = vpop.f32.mrb[0].mxu0
    %337 = vmatprep.mubr.f32.mxu0 0.0
    %338 = vmatmul.mubr.f32.gmra.mrb[0].mxu0 %v204
    %v339 = vpop.f32.mrb[0].mxu0
    %v340 = vadd.f32 0.0, %v339
    %v341 = vpop.f32.mrb[0].mxu0
    %342 = vmatprep.mubr.f32.mxu0 0.0
    %343 = vmatmul.mubr.f32.gmra.mrb[0].mxu0 %v207
    %v344 = vpop.f32.mrb[0].mxu0
    %v345 = vadd.f32 0.0, %v344
    %v346 = vpop.f32.mrb[0].mxu0
    %347 = vmatprep.mubr.f32.mxu0 0.0
    %348 = vmatmul.mubr.f32.gmra.mrb[0].mxu0 %v210
    %v349 = vpop.f32.mrb[0].mxu0
    %v350 = vadd.f32 0.0, %v349
    %v351 = vpop.f32.mrb[0].mxu0
    %352 = vmatprep.mubr.f32.mxu0 0.0
    %353 = vmatmul.mubr.f32.gmra.mrb[0].mxu0 %v213
    %v354 = vpop.f32.mrb[0].mxu0
    %v355 = vadd.f32 0.0, %v354
    %v356 = vpop.f32.mrb[0].mxu0
    %357 = vmatprep.mubr.f32.mxu0 0.0
    %358 = vmatmul.mubr.f32.gmra.mrb[0].mxu0 %v216
    %v359 = vpop.f32.mrb[0].mxu0
    %v360 = vadd.f32 0.0, %v359
    %v361 = vpop.f32.mrb[0].mxu0
    %362 = vdwg.mxu0
    %v363 = vld [vmem:[%s2] sm:$0xff]
    %v364 = vld [vmem:[%s2 + $0x8] sm:$0xff]
    %365 = vmatprep.subr.mxu0 0.0
    %366 = vmatpush1.msra.mxu0 %v285
    %367 = vmatprep.subr.mxu0 0.0
    %368 = vmatpush1.msra.mxu0 %v290
    %369 = vmatprep.subr.mxu0 0.0
    %370 = vmatpush1.msra.mxu0 %v295
    %371 = vmatprep.subr.mxu0 0.0
    %372 = vmatpush1.msra.mxu0 %v300
    %373 = vmatprep.subr.mxu0 0.0
    %374 = vmatpush1.msra.mxu0 %v305
    %375 = vmatprep.subr.mxu0 0.0
    %376 = vmatpush1.msra.mxu0 %v310
    %377 = vmatprep.subr.mxu0 0.0
    %378 = vmatpush1.msra.mxu0 %v315
    %379 = vmatprep.subr.mxu0 0.0
    %380 = vmatpush1.msra.mxu0 %v320
    %381 = vmatprep.subr.mxu0 0.0
    %382 = vmatpush1.msra.mxu0 %v325
    %383 = vmatprep.subr.mxu0 0.0
    %384 = vmatpush1.msra.mxu0 %v330
    %385 = vmatprep.subr.mxu0 0.0
    %386 = vmatpush1.msra.mxu0 %v335
    %387 = vmatprep.subr.mxu0 0.0
    %388 = vmatpush1.msra.mxu0 %v340
    %389 = vmatprep.subr.mxu0 0.0
    %390 = vmatpush1.msra.mxu0 %v345
    %391 = vmatprep.subr.mxu0 0.0
    %392 = vmatpush1.msra.mxu0 %v350
    %393 = vmatprep.subr.mxu0 0.0
    %394 = vmatpush1.msra.mxu0 %v355
    %395 = vmatprep.subr.mxu0 0.0
    %396 = vmatpush1.msra.mxu0 %v360
    %397 = vmatprep.subr.mxu0 0.0
    %398 = vmatpush1.msra.mxu0 0.0
    %399 = vmatprep.subr.mxu0 0.0
    %400 = vmatpush1.msra.mxu0 0.0
    %401 = vmatprep.subr.mxu0 0.0
    %402 = vmatpush1.msra.mxu0 0.0
    %403 = vmatprep.subr.mxu0 0.0
    %404 = vmatpush1.msra.mxu0 0.0
    %405 = vmatprep.subr.mxu0 0.0
    %406 = vmatpush1.msra.mxu0 0.0
    %407 = vmatprep.subr.mxu0 0.0
    %408 = vmatpush1.msra.mxu0 0.0
    %409 = vmatprep.subr.mxu0 0.0
    %410 = vmatpush1.msra.mxu0 0.0
    %411 = vmatprep.subr.mxu0 0.0
    %412 = vmatpush1.msra.mxu0 0.0
    %413 = vmatprep.subr.mxu0 0.0
    %414 = vmatpush1.msra.mxu0 0.0
    %415 = vmatprep.subr.mxu0 0.0
    %416 = vmatpush1.msra.mxu0 0.0
    %417 = vmatprep.subr.mxu0 0.0
    %418 = vmatpush1.msra.mxu0 0.0
    %419 = vmatprep.subr.mxu0 0.0
    %420 = vmatpush1.msra.mxu0 0.0
    %421 = vmatprep.subr.mxu0 0.0
    %422 = vmatpush1.msra.mxu0 0.0
    %423 = vmatprep.subr.mxu0 0.0
    %424 = vmatpush1.msra.mxu0 0.0
    %425 = vmatprep.subr.mxu0 0.0
    %426 = vmatpush1.msra.mxu0 0.0
    %427 = vmatprep.subr.mxu0 0.0
    %428 = vmatpush1.msra.mxu0 0.0
    %429 = vmatprep.mubr.f32.mxu0 0.0
    %430 = vmatmul.mubr.f32.gmra.mrb[0].mxu0 %v363
    %v431 = vpop.f32.mrb[0].mxu0
    %v432 = vadd.f32 0.0, %v431
    %v433 = vpop.f32.mrb[0].mxu0
    %434 = vmatprep.mubr.f32.mxu0 0.0
    %435 = vmatmul.mubr.f32.gmra.mrb[0].mxu0 %v364
    %v436 = vpop.f32.mrb[0].mxu0
    %v437 = vadd.f32 0.0, %v436
    %v438 = vpop.f32.mrb[0].mxu0
    %439 = vdwg.mxu0
    %v440 = vld [vmem:[%s4] sm:$0xff]
    %v441 = vld [vmem:[%s4 + $0x8] sm:$0xff]
    %v442 = vld [vmem:[%s4 + $0x10] sm:$0xff]
    %v443 = vld [vmem:[%s4 + $0x18] sm:$0xff]
    %v444 = vld [vmem:[%s5] sm:$0x1]
    %v446 = vlaneseq
    %v447 = vshrl.u32 %v446, 7
    %v448 = vsub.s32 0, %v447
    %v449 = vrot.slane %v444, %v448
    %vm451 = vcmask 261120
    %v453 = vsel %vm451, %v432, 0
    %v456 = vsel %vm451, %v437, 0
    %458 = vmatprep.subr.mxu0 0.0
    %459 = vmatpush1.msra.mxu0 %v440
    %460 = vmatprep.subr.mxu0 0.0
    %461 = vmatpush1.msra.mxu0 %v441
    %462 = vmatprep.subr.mxu0 0.0
    %463 = vmatpush1.msra.mxu0 %v442
    %464 = vmatprep.subr.mxu0 0.0
    %465 = vmatpush1.msra.mxu0 %v443
    %466 = vmatprep.subr.mxu0 0.0
    %467 = vmatpush1.msra.mxu0 0.0
    %468 = vmatprep.subr.mxu0 0.0
    %469 = vmatpush1.msra.mxu0 0.0
    %470 = vmatprep.subr.mxu0 0.0
    %471 = vmatpush1.msra.mxu0 0.0
    %472 = vmatprep.subr.mxu0 0.0
    %473 = vmatpush1.msra.mxu0 0.0
    %474 = vmatprep.subr.mxu0 0.0
    %475 = vmatpush1.msra.mxu0 0.0
    %476 = vmatprep.subr.mxu0 0.0
    %477 = vmatpush1.msra.mxu0 0.0
    %478 = vmatprep.subr.mxu0 0.0
    %479 = vmatpush1.msra.mxu0 0.0
    %480 = vmatprep.subr.mxu0 0.0
    %481 = vmatpush1.msra.mxu0 0.0
    %482 = vmatprep.subr.mxu0 0.0
    %483 = vmatpush1.msra.mxu0 0.0
    %484 = vmatprep.subr.mxu0 0.0
    %485 = vmatpush1.msra.mxu0 0.0
    %486 = vmatprep.subr.mxu0 0.0
    %487 = vmatpush1.msra.mxu0 0.0
    %488 = vmatprep.subr.mxu0 0.0
    %489 = vmatpush1.msra.mxu0 0.0
    %490 = vmatprep.subr.mxu0 0.0
    %491 = vmatpush1.msra.mxu0 0.0
    %492 = vmatprep.subr.mxu0 0.0
    %493 = vmatpush1.msra.mxu0 0.0
    %494 = vmatprep.subr.mxu0 0.0
    %495 = vmatpush1.msra.mxu0 0.0
    %496 = vmatprep.subr.mxu0 0.0
    %497 = vmatpush1.msra.mxu0 0.0
    %498 = vmatprep.subr.mxu0 0.0
    %499 = vmatpush1.msra.mxu0 0.0
    %500 = vmatprep.subr.mxu0 0.0
    %501 = vmatpush1.msra.mxu0 0.0
    %502 = vmatprep.subr.mxu0 0.0
    %503 = vmatpush1.msra.mxu0 0.0
    %504 = vmatprep.subr.mxu0 0.0
    %505 = vmatpush1.msra.mxu0 0.0
    %506 = vmatprep.subr.mxu0 0.0
    %507 = vmatpush1.msra.mxu0 0.0
    %508 = vmatprep.subr.mxu0 0.0
    %509 = vmatpush1.msra.mxu0 0.0
    %510 = vmatprep.subr.mxu0 0.0
    %511 = vmatpush1.msra.mxu0 0.0
    %512 = vmatprep.subr.mxu0 0.0
    %513 = vmatpush1.msra.mxu0 0.0
    %514 = vmatprep.subr.mxu0 0.0
    %515 = vmatpush1.msra.mxu0 0.0
    %516 = vmatprep.subr.mxu0 0.0
    %517 = vmatpush1.msra.mxu0 0.0
    %518 = vmatprep.subr.mxu0 0.0
    %519 = vmatpush1.msra.mxu0 0.0
    %520 = vmatprep.subr.mxu0 0.0
    %521 = vmatpush1.msra.mxu0 0.0
    %522 = vmatprep.mubr.f32.mxu0 0.0
    %523 = vmatmul.mubr.f32.gmra.mrb[0].mxu0 %v453
    %v524 = vpop.f32.mrb[0].mxu0
    %v525 = vadd.f32 %v449, %v524
    %v526 = vpop.f32.mrb[0].mxu0
    %527 = vmatprep.mubr.f32.mxu0 0.0
    %528 = vmatmul.mubr.f32.gmra.mrb[0].mxu0 %v456
    %v529 = vpop.f32.mrb[0].mxu0
    %v530 = vadd.f32 %v449, %v529
    %v531 = vpop.f32.mrb[0].mxu0
    %532 = vdwg.mxu0
    %v533 = vld [vmem:[#allocation2] sm:$0xff]
    %v534 = vld [vmem:[#allocation2 + $0x8] sm:$0xff]
    %v536 = vsel %vm451, %v525, 0
    %v539 = vsel %vm451, %v530, 0
    %v542 = vsel %vm451, %v285, 0
    %v545 = vsel %vm451, %v290, 0
    %v548 = vsel %vm451, %v295, 0
    %v551 = vsel %vm451, %v300, 0
    %v554 = vsel %vm451, %v305, 0
    %v557 = vsel %vm451, %v310, 0
    %v560 = vsel %vm451, %v315, 0
    %v563 = vsel %vm451, %v320, 0
    %v566 = vsel %vm451, %v325, 0
    %v569 = vsel %vm451, %v330, 0
    %v572 = vsel %vm451, %v335, 0
    %v575 = vsel %vm451, %v340, 0
    %v578 = vsel %vm451, %v345, 0
    %v581 = vsel %vm451, %v350, 0
    %v584 = vsel %vm451, %v355, 0
    %v587 = vsel %vm451, %v360, 0
    %589 = vmatprep.subr.mxu0 0.0
    %590 = vmatpush1.xpose.msra.mxu0 %v542
    %591 = vmatprep.subr.mxu0 0.0
    %592 = vmatpush1.xpose.msra.mxu0 %v545
    %593 = vmatprep.subr.mxu0 0.0
    %594 = vmatpush1.xpose.msra.mxu0 %v548
    %595 = vmatprep.subr.mxu0 0.0
    %596 = vmatpush1.xpose.msra.mxu0 %v551
    %597 = vmatprep.subr.mxu0 0.0
    %598 = vmatpush1.xpose.msra.mxu0 %v554
    %599 = vmatprep.subr.mxu0 0.0
    %600 = vmatpush1.xpose.msra.mxu0 %v557
    %601 = vmatprep.subr.mxu0 0.0
    %602 = vmatpush1.xpose.msra.mxu0 %v560
    %603 = vmatprep.subr.mxu0 0.0
    %604 = vmatpush1.xpose.msra.mxu0 %v563
    %605 = vmatprep.subr.mxu0 0.0
    %606 = vmatpush1.xpose.msra.mxu0 %v566
    %607 = vmatprep.subr.mxu0 0.0
    %608 = vmatpush1.xpose.msra.mxu0 %v569
    %609 = vmatprep.subr.mxu0 0.0
    %610 = vmatpush1.xpose.msra.mxu0 %v572
    %611 = vmatprep.subr.mxu0 0.0
    %612 = vmatpush1.xpose.msra.mxu0 %v575
    %613 = vmatprep.subr.mxu0 0.0
    %614 = vmatpush1.xpose.msra.mxu0 %v578
    %615 = vmatprep.subr.mxu0 0.0
    %616 = vmatpush1.xpose.msra.mxu0 %v581
    %617 = vmatprep.subr.mxu0 0.0
    %618 = vmatpush1.xpose.msra.mxu0 %v584
    %619 = vmatprep.subr.mxu0 0.0
    %620 = vmatpush1.xpose.msra.mxu0 %v587
    %621 = vmatprep.subr.mxu0 0.0
    %622 = vmatpush1.xpose.msra.mxu0 0.0
    %623 = vmatprep.subr.mxu0 0.0
    %624 = vmatpush1.xpose.msra.mxu0 0.0
    %625 = vmatprep.subr.mxu0 0.0
    %626 = vmatpush1.xpose.msra.mxu0 0.0
    %627 = vmatprep.subr.mxu0 0.0
    %628 = vmatpush1.xpose.msra.mxu0 0.0
    %629 = vmatprep.subr.mxu0 0.0
    %630 = vmatpush1.xpose.msra.mxu0 0.0
    %631 = vmatprep.subr.mxu0 0.0
    %632 = vmatpush1.xpose.msra.mxu0 0.0
    %633 = vmatprep.subr.mxu0 0.0
    %634 = vmatpush1.xpose.msra.mxu0 0.0
    %635 = vmatprep.subr.mxu0 0.0
    %636 = vmatpush1.xpose.msra.mxu0 0.0
    %637 = vmatprep.subr.mxu0 0.0
    %638 = vmatpush1.xpose.msra.mxu0 0.0
    %639 = vmatprep.subr.mxu0 0.0
    %640 = vmatpush1.xpose.msra.mxu0 0.0
    %641 = vmatprep.subr.mxu0 0.0
    %642 = vmatpush1.xpose.msra.mxu0 0.0
    %643 = vmatprep.subr.mxu0 0.0
    %644 = vmatpush1.xpose.msra.mxu0 0.0
    %645 = vmatprep.subr.mxu0 0.0
    %646 = vmatpush1.xpose.msra.mxu0 0.0
    %647 = vmatprep.subr.mxu0 0.0
    %648 = vmatpush1.xpose.msra.mxu0 0.0
    %649 = vmatprep.subr.mxu0 0.0
    %650 = vmatpush1.xpose.msra.mxu0 0.0
    %651 = vmatprep.subr.mxu0 0.0
    %652 = vmatpush1.xpose.msra.mxu0 0.0
    %653 = vmatprep.mubr.f32.mxu0 0.0
    %654 = vmatmul.mubr.f32.gmra.mrb[0].mxu0 %v536
    %v655 = vpop.f32.mrb[0].mxu0
    %v656 = vadd.f32 %v533, %v655
    %v657 = vpop.f32.mrb[0].mxu0
    %658 = vmatprep.mubr.f32.mxu0 0.0
    %659 = vmatmul.mubr.f32.gmra.mrb[0].mxu0 %v539
    %v660 = vpop.f32.mrb[0].mxu0
    %v661 = vadd.f32 %v534, %v660
    %v662 = vpop.f32.mrb[0].mxu0
    %663 = vdwg.mxu0
    %664 = vmax.xlane.f32.xlu0 %v656
    %v665 = vpop.xlane.xlu0 %664
    %666 = vmax.xlane.f32.xlu0 %v661
    %v667 = vpop.xlane.xlu0 %666
    %v668 = vsub.f32 %v656, %v665
    %v669 = vsub.f32 %v661, %v667
    %v670 = vmul.f32 %v668, 1.442695
    %v671 = vpow.pop %v670
    %v672 = vmul.f32 %v669, 1.442695
    %v673 = vpow.pop %v672
    %674 = vadd.xlane.f32.xlu0 %v671
    %v675 = vpop.xlane.xlu0 %674
    %676 = vadd.xlane.f32.xlu0 %v673
    %v677 = vpop.xlane.xlu0 %676
    %v678 = vrcp.pop %v675
    %v679 = vrcp.pop %v677
    %v680 = vmul.f32 %v671, %v678
    %v681 = vmul.f32 %v673, %v679
    %v682 = vld [vmem:[%s6] sm:$0xff]
    %v683 = vld [vmem:[%s6 + $0x8] sm:$0xff]
    %v684 = vld [vmem:[%s6 + $0x10] sm:$0xff]
    %v685 = vld [vmem:[%s6 + $0x18] sm:$0xff]
    %v686 = vld [vmem:[%s7] sm:$0x1]
    %v688 = vlaneseq
    %v689 = vshrl.u32 %v688, 7
    %v690 = vsub.s32 0, %v689
    %v691 = vrot.slane %v686, %v690
    %693 = vmatprep.subr.mxu0 0.0
    %694 = vmatpush1.msra.mxu0 %v682
    %695 = vmatprep.subr.mxu0 0.0
    %696 = vmatpush1.msra.mxu0 %v683
    %697 = vmatprep.subr.mxu0 0.0
    %698 = vmatpush1.msra.mxu0 %v684
    %699 = vmatprep.subr.mxu0 0.0
    %700 = vmatpush1.msra.mxu0 %v685
    %701 = vmatprep.subr.mxu0 0.0
    %702 = vmatpush1.msra.mxu0 0.0
    %703 = vmatprep.subr.mxu0 0.0
    %704 = vmatpush1.msra.mxu0 0.0
    %705 = vmatprep.subr.mxu0 0.0
    %706 = vmatpush1.msra.mxu0 0.0
    %707 = vmatprep.subr.mxu0 0.0
    %708 = vmatpush1.msra.mxu0 0.0
    %709 = vmatprep.subr.mxu0 0.0
    %710 = vmatpush1.msra.mxu0 0.0
    %711 = vmatprep.subr.mxu0 0.0
    %712 = vmatpush1.msra.mxu0 0.0
    %713 = vmatprep.subr.mxu0 0.0
    %714 = vmatpush1.msra.mxu0 0.0
    %715 = vmatprep.subr.mxu0 0.0
    %716 = vmatpush1.msra.mxu0 0.0
    %717 = vmatprep.subr.mxu0 0.0
    %718 = vmatpush1.msra.mxu0 0.0
    %719 = vmatprep.subr.mxu0 0.0
    %720 = vmatpush1.msra.mxu0 0.0
    %721 = vmatprep.subr.mxu0 0.0
    %722 = vmatpush1.msra.mxu0 0.0
    %723 = vmatprep.subr.mxu0 0.0
    %724 = vmatpush1.msra.mxu0 0.0
    %725 = vmatprep.subr.mxu0 0.0
    %726 = vmatpush1.msra.mxu0 0.0
    %727 = vmatprep.subr.mxu0 0.0
    %728 = vmatpush1.msra.mxu0 0.0
    %729 = vmatprep.subr.mxu0 0.0
    %730 = vmatpush1.msra.mxu0 0.0
    %731 = vmatprep.subr.mxu0 0.0
    %732 = vmatpush1.msra.mxu0 0.0
    %733 = vmatprep.subr.mxu0 0.0
    %734 = vmatpush1.msra.mxu0 0.0
    %735 = vmatprep.subr.mxu0 0.0
    %736 = vmatpush1.msra.mxu0 0.0
    %737 = vmatprep.subr.mxu0 0.0
    %738 = vmatpush1.msra.mxu0 0.0
    %739 = vmatprep.subr.mxu0 0.0
    %740 = vmatpush1.msra.mxu0 0.0
    %741 = vmatprep.subr.mxu0 0.0
    %742 = vmatpush1.msra.mxu0 0.0
    %743 = vmatprep.subr.mxu0 0.0
    %744 = vmatpush1.msra.mxu0 0.0
    %745 = vmatprep.subr.mxu0 0.0
    %746 = vmatpush1.msra.mxu0 0.0
    %747 = vmatprep.subr.mxu0 0.0
    %748 = vmatpush1.msra.mxu0 0.0
    %749 = vmatprep.subr.mxu0 0.0
    %750 = vmatpush1.msra.mxu0 0.0
    %751 = vmatprep.subr.mxu0 0.0
    %752 = vmatpush1.msra.mxu0 0.0
    %753 = vmatprep.subr.mxu0 0.0
    %754 = vmatpush1.msra.mxu0 0.0
    %755 = vmatprep.subr.mxu0 0.0
    %756 = vmatpush1.msra.mxu0 0.0
    %757 = vmatprep.mubr.f32.mxu0 0.0
    %758 = vmatmul.mubr.f32.gmra.mrb[0].mxu0 %v542
    %v759 = vpop.f32.mrb[0].mxu0
    %v760 = vadd.f32 %v691, %v759
    %v761 = vpop.f32.mrb[0].mxu0
    %762 = vmatprep.mubr.f32.mxu0 0.0
    %763 = vmatmul.mubr.f32.gmra.mrb[0].mxu0 %v545
    %v764 = vpop.f32.mrb[0].mxu0
    %v765 = vadd.f32 %v691, %v764
    %v766 = vpop.f32.mrb[0].mxu0
    %767 = vmatprep.mubr.f32.mxu0 0.0
    %768 = vmatmul.mubr.f32.gmra.mrb[0].mxu0 %v548
    %v769 = vpop.f32.mrb[0].mxu0
    %v770 = vadd.f32 %v691, %v769
    %v771 = vpop.f32.mrb[0].mxu0
    %772 = vmatprep.mubr.f32.mxu0 0.0
    %773 = vmatmul.mubr.f32.gmra.mrb[0].mxu0 %v551
    %v774 = vpop.f32.mrb[0].mxu0
    %v775 = vadd.f32 %v691, %v774
    %v776 = vpop.f32.mrb[0].mxu0
    %777 = vmatprep.mubr.f32.mxu0 0.0
    %778 = vmatmul.mubr.f32.gmra.mrb[0].mxu0 %v554
    %v779 = vpop.f32.mrb[0].mxu0
    %v780 = vadd.f32 %v691, %v779
    %v781 = vpop.f32.mrb[0].mxu0
    %782 = vmatprep.mubr.f32.mxu0 0.0
    %783 = vmatmul.mubr.f32.gmra.mrb[0].mxu0 %v557
    %v784 = vpop.f32.mrb[0].mxu0
    %v785 = vadd.f32 %v691, %v784
    %v786 = vpop.f32.mrb[0].mxu0
    %787 = vmatprep.mubr.f32.mxu0 0.0
    %788 = vmatmul.mubr.f32.gmra.mrb[0].mxu0 %v560
    %v789 = vpop.f32.mrb[0].mxu0
    %v790 = vadd.f32 %v691, %v789
    %v791 = vpop.f32.mrb[0].mxu0
    %792 = vmatprep.mubr.f32.mxu0 0.0
    %793 = vmatmul.mubr.f32.gmra.mrb[0].mxu0 %v563
    %v794 = vpop.f32.mrb[0].mxu0
    %v795 = vadd.f32 %v691, %v794
    %v796 = vpop.f32.mrb[0].mxu0
    %797 = vmatprep.mubr.f32.mxu0 0.0
    %798 = vmatmul.mubr.f32.gmra.mrb[0].mxu0 %v566
    %v799 = vpop.f32.mrb[0].mxu0
    %v800 = vadd.f32 %v691, %v799
    %v801 = vpop.f32.mrb[0].mxu0
    %802 = vmatprep.mubr.f32.mxu0 0.0
    %803 = vmatmul.mubr.f32.gmra.mrb[0].mxu0 %v569
    %v804 = vpop.f32.mrb[0].mxu0
    %v805 = vadd.f32 %v691, %v804
    %v806 = vpop.f32.mrb[0].mxu0
    %807 = vmatprep.mubr.f32.mxu0 0.0
    %808 = vmatmul.mubr.f32.gmra.mrb[0].mxu0 %v572
    %v809 = vpop.f32.mrb[0].mxu0
    %v810 = vadd.f32 %v691, %v809
    %v811 = vpop.f32.mrb[0].mxu0
    %812 = vmatprep.mubr.f32.mxu0 0.0
    %813 = vmatmul.mubr.f32.gmra.mrb[0].mxu0 %v575
    %v814 = vpop.f32.mrb[0].mxu0
    %v815 = vadd.f32 %v691, %v814
    %v816 = vpop.f32.mrb[0].mxu0
    %817 = vmatprep.mubr.f32.mxu0 0.0
    %818 = vmatmul.mubr.f32.gmra.mrb[0].mxu0 %v578
    %v819 = vpop.f32.mrb[0].mxu0
    %v820 = vadd.f32 %v691, %v819
    %v821 = vpop.f32.mrb[0].mxu0
    %822 = vmatprep.mubr.f32.mxu0 0.0
    %823 = vmatmul.mubr.f32.gmra.mrb[0].mxu0 %v581
    %v824 = vpop.f32.mrb[0].mxu0
    %v825 = vadd.f32 %v691, %v824
    %v826 = vpop.f32.mrb[0].mxu0
    %827 = vmatprep.mubr.f32.mxu0 0.0
    %828 = vmatmul.mubr.f32.gmra.mrb[0].mxu0 %v584
    %v829 = vpop.f32.mrb[0].mxu0
    %v830 = vadd.f32 %v691, %v829
    %v831 = vpop.f32.mrb[0].mxu0
    %832 = vmatprep.mubr.f32.mxu0 0.0
    %833 = vmatmul.mubr.f32.gmra.mrb[0].mxu0 %v587
    %v834 = vpop.f32.mrb[0].mxu0
    %v835 = vadd.f32 %v691, %v834
    %v836 = vpop.f32.mrb[0].mxu0
    %837 = vdwg.mxu0
    %838 = vmatprep.subr.mxu0 0.0
    %839 = vmatpush1.msra.mxu0 %v760
    %840 = vmatprep.subr.mxu0 0.0
    %841 = vmatpush1.msra.mxu0 %v765
    %842 = vmatprep.subr.mxu0 0.0
    %843 = vmatpush1.msra.mxu0 %v770
    %844 = vmatprep.subr.mxu0 0.0
    %845 = vmatpush1.msra.mxu0 %v775
    %846 = vmatprep.subr.mxu0 0.0
    %847 = vmatpush1.msra.mxu0 %v780
    %848 = vmatprep.subr.mxu0 0.0
    %849 = vmatpush1.msra.mxu0 %v785
    %850 = vmatprep.subr.mxu0 0.0
    %851 = vmatpush1.msra.mxu0 %v790
    %852 = vmatprep.subr.mxu0 0.0
    %853 = vmatpush1.msra.mxu0 %v795
    %854 = vmatprep.subr.mxu0 0.0
    %855 = vmatpush1.msra.mxu0 %v800
    %856 = vmatprep.subr.mxu0 0.0
    %857 = vmatpush1.msra.mxu0 %v805
    %858 = vmatprep.subr.mxu0 0.0
    %859 = vmatpush1.msra.mxu0 %v810
    %860 = vmatprep.subr.mxu0 0.0
    %861 = vmatpush1.msra.mxu0 %v815
    %862 = vmatprep.subr.mxu0 0.0
    %863 = vmatpush1.msra.mxu0 %v820
    %864 = vmatprep.subr.mxu0 0.0
    %865 = vmatpush1.msra.mxu0 %v825
    %866 = vmatprep.subr.mxu0 0.0
    %867 = vmatpush1.msra.mxu0 %v830
    %868 = vmatprep.subr.mxu0 0.0
    %869 = vmatpush1.msra.mxu0 %v835
    %870 = vmatprep.subr.mxu0 0.0
    %871 = vmatpush1.msra.mxu0 0.0
    %872 = vmatprep.subr.mxu0 0.0
    %873 = vmatpush1.msra.mxu0 0.0
    %874 = vmatprep.subr.mxu0 0.0
    %875 = vmatpush1.msra.mxu0 0.0
    %876 = vmatprep.subr.mxu0 0.0
    %877 = vmatpush1.msra.mxu0 0.0
    %878 = vmatprep.subr.mxu0 0.0
    %879 = vmatpush1.msra.mxu0 0.0
    %880 = vmatprep.subr.mxu0 0.0
    %881 = vmatpush1.msra.mxu0 0.0
    %882 = vmatprep.subr.mxu0 0.0
    %883 = vmatpush1.msra.mxu0 0.0
    %884 = vmatprep.subr.mxu0 0.0
    %885 = vmatpush1.msra.mxu0 0.0
    %886 = vmatprep.subr.mxu0 0.0
    %887 = vmatpush1.msra.mxu0 0.0
    %888 = vmatprep.subr.mxu0 0.0
    %889 = vmatpush1.msra.mxu0 0.0
    %890 = vmatprep.subr.mxu0 0.0
    %891 = vmatpush1.msra.mxu0 0.0
    %892 = vmatprep.subr.mxu0 0.0
    %893 = vmatpush1.msra.mxu0 0.0
    %894 = vmatprep.subr.mxu0 0.0
    %895 = vmatpush1.msra.mxu0 0.0
    %896 = vmatprep.subr.mxu0 0.0
    %897 = vmatpush1.msra.mxu0 0.0
    %898 = vmatprep.subr.mxu0 0.0
    %899 = vmatpush1.msra.mxu0 0.0
    %900 = vmatprep.subr.mxu0 0.0
    %901 = vmatpush1.msra.mxu0 0.0
    %902 = vmatprep.mubr.f32.mxu0 0.0
    %903 = vmatmul.mubr.f32.gmra.mrb[0].mxu0 %v680
    %v904 = vpop.f32.mrb[0].mxu0
    %v905 = vadd.f32 0.0, %v904
    %v906 = vpop.f32.mrb[0].mxu0
    %907 = vmatprep.mubr.f32.mxu0 0.0
    %908 = vmatmul.mubr.f32.gmra.mrb[0].mxu0 %v681
    %v909 = vpop.f32.mrb[0].mxu0
    %v910 = vadd.f32 0.0, %v909
    %v911 = vpop.f32.mrb[0].mxu0
    %912 = vdwg.mxu0
    %v913 = vld [vmem:[%s8] sm:$0xff]
    %v914 = vld [vmem:[%s8 + $0x8] sm:$0xff]
    %v915 = vld [vmem:[%s8 + $0x10] sm:$0xff]
    %v916 = vld [vmem:[%s8 + $0x18] sm:$0xff]
    %v917 = vld [vmem:[%s9] sm:$0x1]
    %v919 = vlaneseq
    %v920 = vshrl.u32 %v919, 7
    %v921 = vsub.s32 0, %v920
    %v922 = vrot.slane %v917, %v921
    %v925 = vsel %vm451, %v905, 0
    %v928 = vsel %vm451, %v910, 0
    %930 = vmatprep.subr.mxu0 0.0
    %931 = vmatpush1.msra.mxu0 %v913
    %932 = vmatprep.subr.mxu0 0.0
    %933 = vmatpush1.msra.mxu0 %v914
    %934 = vmatprep.subr.mxu0 0.0
    %935 = vmatpush1.msra.mxu0 %v915
    %936 = vmatprep.subr.mxu0 0.0
    %937 = vmatpush1.msra.mxu0 %v916
    %938 = vmatprep.subr.mxu0 0.0
    %939 = vmatpush1.msra.mxu0 0.0
    %940 = vmatprep.subr.mxu0 0.0
    %941 = vmatpush1.msra.mxu0 0.0
    %942 = vmatprep.subr.mxu0 0.0
    %943 = vmatpush1.msra.mxu0 0.0
    %944 = vmatprep.subr.mxu0 0.0
    %945 = vmatpush1.msra.mxu0 0.0
    %946 = vmatprep.subr.mxu0 0.0
    %947 = vmatpush1.msra.mxu0 0.0
    %948 = vmatprep.subr.mxu0 0.0
    %949 = vmatpush1.msra.mxu0 0.0
    %950 = vmatprep.subr.mxu0 0.0
    %951 = vmatpush1.msra.mxu0 0.0
    %952 = vmatprep.subr.mxu0 0.0
    %953 = vmatpush1.msra.mxu0 0.0
    %954 = vmatprep.subr.mxu0 0.0
    %955 = vmatpush1.msra.mxu0 0.0
    %956 = vmatprep.subr.mxu0 0.0
    %957 = vmatpush1.msra.mxu0 0.0
    %958 = vmatprep.subr.mxu0 0.0
    %959 = vmatpush1.msra.mxu0 0.0
    %960 = vmatprep.subr.mxu0 0.0
    %961 = vmatpush1.msra.mxu0 0.0
    %962 = vmatprep.subr.mxu0 0.0
    %963 = vmatpush1.msra.mxu0 0.0
    %964 = vmatprep.subr.mxu0 0.0
    %965 = vmatpush1.msra.mxu0 0.0
    %966 = vmatprep.subr.mxu0 0.0
    %967 = vmatpush1.msra.mxu0 0.0
    %968 = vmatprep.subr.mxu0 0.0
    %969 = vmatpush1.msra.mxu0 0.0
    %970 = vmatprep.subr.mxu0 0.0
    %971 = vmatpush1.msra.mxu0 0.0
    %972 = vmatprep.subr.mxu0 0.0
    %973 = vmatpush1.msra.mxu0 0.0
    %974 = vmatprep.subr.mxu0 0.0
    %975 = vmatpush1.msra.mxu0 0.0
    %976 = vmatprep.subr.mxu0 0.0
    %977 = vmatpush1.msra.mxu0 0.0
    %978 = vmatprep.subr.mxu0 0.0
    %979 = vmatpush1.msra.mxu0 0.0
    %980 = vmatprep.subr.mxu0 0.0
    %981 = vmatpush1.msra.mxu0 0.0
    %982 = vmatprep.subr.mxu0 0.0
    %983 = vmatpush1.msra.mxu0 0.0
    %984 = vmatprep.subr.mxu0 0.0
    %985 = vmatpush1.msra.mxu0 0.0
    %986 = vmatprep.subr.mxu0 0.0
    %987 = vmatpush1.msra.mxu0 0.0
    %988 = vmatprep.subr.mxu0 0.0
    %989 = vmatpush1.msra.mxu0 0.0
    %990 = vmatprep.subr.mxu0 0.0
    %991 = vmatpush1.msra.mxu0 0.0
    %992 = vmatprep.subr.mxu0 0.0
    %993 = vmatpush1.msra.mxu0 0.0
    %994 = vmatprep.mubr.f32.mxu0 0.0
    %995 = vmatmul.mubr.f32.gmra.mrb[0].mxu0 %v925
    %v996 = vpop.f32.mrb[0].mxu0
    %v997 = vadd.f32 %v922, %v996
    %v998 = vpop.f32.mrb[0].mxu0
    %999 = vmatprep.mubr.f32.mxu0 0.0
    %1000 = vmatmul.mubr.f32.gmra.mrb[0].mxu0 %v928
    %v1001 = vpop.f32.mrb[0].mxu0
    %v1002 = vadd.f32 %v922, %v1001
    %v1003 = vpop.f32.mrb[0].mxu0
    %1004 = vdwg.mxu0
    %1005 = vst [vmem:[#allocation5] sm:$0xff] %v997
    %1006 = vst [vmem:[#allocation5 + $0x8] sm:$0xff] %v1002
    %v1007 = vadd.f32 %v680, %v681
    %v1008 = vrot.slane %v1007, 4
    %v1009 = vadd.f32 %v1007, %v1008
    %v1010 = vrot.slane %v1009, 2
    %v1011 = vadd.f32 %v1009, %v1010
    %v1012 = vrot.slane %v1011, 1
    %v1013 = vadd.f32 %v1011, %v1012
    %1014 = vst [vmem:[#allocation6] sm:$0x1] %v1013
    // Predicated region
    $region46: #{tpu_custom_call.1} parent=1 // pred_check
      _
    $region47: #{tpu_custom_call.1} parent=1 // pred_check_branch
      %1016 = sbr.rel (0) target = $region49
    $region48: #{tpu_custom_call.1} parent=1 // pred_region
      %s1018 = ssub.s32 256, 256
      %1019 = vsyncadd [#allocation4], %s1018
      %s1020 = sshll.u32 [#allocation5], 4
      %s1021 = int_to_ptr.vmem [resolvable:$true] %s1020
      %1026 = dma.vmem_to_hbm [thread:$0]  %s1021, 256, %s10, [#allocation4], 128, 128, 8
    $region49: #{tpu_custom_call.1} parent=1 // pred_fallthru
      _
    // Predicated region
    $region50: #{tpu_custom_call.1} parent=1 // pred_check
      _
    $region51: #{tpu_custom_call.1} parent=1 // pred_check_branch
      %1028 = sbr.rel (0) target = $region53
    $region52: #{tpu_custom_call.1} parent=1 // pred_region
      %s1030 = ssub.s32 16, 16
      %1031 = vsyncadd [#allocation7], %s1030
      %s1033 = sshll.u32 [#allocation6], 4
      %s1034 = int_to_ptr.vmem [resolvable:$true] %s1033
      %1036 = dma.vmem_to_hbm [thread:$0]  %s1034, 16, %s11, [#allocation7]
    $region53: #{tpu_custom_call.1} parent=1 // pred_fallthru
      _
    // Predicated region
    $region54: #{tpu_custom_call.1} parent=1 // pred_check
      _
    $region55: #{tpu_custom_call.1} parent=1 // pred_check_branch
      %1038 = sbr.rel (0) target = $region57
    $region56: #{tpu_custom_call.1} parent=1 // pred_region
      %1039 = dma.done [#allocation4], 256
    $region57: #{tpu_custom_call.1} parent=1 // pred_fallthru
      _
    // Predicated region
    $region58: #{tpu_custom_call.1} parent=1 // pred_check
      _
    $region59: #{tpu_custom_call.1} parent=1 // pred_check_branch
      %1041 = sbr.rel (0) target = $region61
    $region60: #{tpu_custom_call.1} parent=1 // pred_region
      %1042 = dma.done [#allocation7], 16
    $region61: #{tpu_custom_call.1} parent=1 // pred_fallthru
      _
    %1043 = vsyncpa [#allocation3], 1
    %1044 = vsyncpa [#allocation4], 1
    %1045 = vsyncpa [#allocation7], 1

</llo_original>
